<compile_context>
chip_gen: v5e
topology: v5e:2x2
jax: 0.10.0
libtpu: 0.0.40
codegen_flags: <defaults>
</compile_context>

<pallas_src>
import functools

import jax
import jax.numpy as jnp
from jax.experimental import pallas as pl
from jax.experimental.pallas import tpu as pltpu


def _is_v5e() -> bool:
    """v5e: no bf16 VALU, smaller MXU, 16 MiB scoped-VMEM default."""
    try:
        kind = jax.devices()[0].device_kind.lower()
        return ("v5 lite" in kind) or ("v5e" in kind) or ("v5litepod" in kind)
    except Exception:
        return False


def value_net_kernel(x_ref, w1_ref, b1_ref, w2_ref, b2_ref, wv_ref, bv_ref,
                     o_ref, *, mxu_head: bool):
    """mxu_head=True  (v6e/v7x): bf16 bias-add/ReLU epilogues + MXU value head.
    mxu_head=False (v5e):       f32 epilogues + VPU multiply / XLU lane-reduce head."""
    x = x_ref[...].astype(jnp.bfloat16)
    # fc1: bf16 MXU operands, f32 accumulate.
    h1 = jnp.dot(x, w1_ref[...], preferred_element_type=jnp.float32)
    if mxu_head:
        # bf16 epilogue: the bf16 cast is needed for the next matmul anyway, so
        # bias-add + ReLU in bf16 halves VPU lane-op pressure on v6e/v7x.
        h1 = jnp.maximum(h1.astype(jnp.bfloat16) + b1_ref[...], 0)
        h2 = jnp.dot(h1, w2_ref[...], preferred_element_type=jnp.float32)
        h2 = jnp.maximum(h2.astype(jnp.bfloat16) + b2_ref[...], 0)
        # value head (out_features == 1) on the MXU: wv is a (fc2, 1) bf16 column.
        v = jnp.dot(h2, wv_ref[...], preferred_element_type=jnp.float32) + bv_ref[...]
    else:
        h1 = jnp.maximum(h1 + b1_ref[...], 0.0)
        h2 = jnp.dot(h1.astype(jnp.bfloat16), w2_ref[...],
                     preferred_element_type=jnp.float32)
        h2 = jnp.maximum(h2 + b2_ref[...], 0.0)
        # value head on VPU + XLU (MXU is already the crit unit on v5e).
        v = jnp.sum(h2 * wv_ref[...], axis=-1, keepdims=True) + bv_ref[...]
    # TODO(synk): a lane-dense (num_steps, tm) output slab would replace the
    # masked (tm, 1) column stores; only worth it if stores show in the bundle.
    o_ref[...] = v.astype(o_ref.dtype)


def _round_up(x, m):
    return ((x + m - 1) // m) * m


def _pick_tile(batch, *, low_vmem):
    # Big tiles amortize the ~0.35 us per-grid-step overhead; keep >= 2 grid
    # steps at large B so v7x megacore can shard the "parallel" axis.  Cap a
    # bit lower on v5e (16 MiB scoped-VMEM default vs 32 MiB on v6e/v7x).
    cap = 2048 if low_vmem else 4096
    tm = min(cap, _round_up(pl.cdiv(batch, 2), 8))
    return max(8, min(tm, _round_up(batch, 8)))


def prepare_params(w1, b1, w2, b2, wv, bv, *, mxu_head=True):
    """One-time cast / layout outside the jitted forward (no per-call HBM casts).
    w1/w2 -> bf16 MXU operands.  mxu_head=True: biases bf16, wv as (fc2, 1)
    bf16 column for the MXU head.  mxu_head=False: f32 biases, (1, fc2) wv row."""
    w1b = w1.astype(jnp.bfloat16)
    w2b = w2.astype(jnp.bfloat16)
    if mxu_head:
        return (w1b, b1.astype(jnp.bfloat16), w2b, b2.astype(jnp.bfloat16),
                wv.astype(jnp.bfloat16).T, bv)
    return (w1b, b1, w2b, b2, wv, bv)


@functools.partial(jax.jit, static_argnames=("mxu_head",))
def value_network_forward(state, w1, b1, w2, b2, wv, bv, *, mxu_head=True):
    """state: (B, input_dims) f32; params as produced by prepare_params."""
    B, in_dims = state.shape
    fc1 = w1.shape[1]
    fc2 = w2.shape[1]
    tm = _pick_tile(B, low_vmem=not mxu_head)
    grid = (pl.cdiv(B, tm),)

    flops = 2 * B * (in_dims * fc1 + fc1 * fc2 + fc2)
    bytes_accessed = (
        B * in_dims * 4              # state
        + in_dims * fc1 * 2          # w1 (bf16)
        + fc1 * fc2 * 2              # w2 (bf16)
        + fc1 * b1.dtype.itemsize    # b1
        + fc2 * b2.dtype.itemsize    # b2
        + fc2 * wv.dtype.itemsize    # wv
        + 4                          # bv
        + B * 4                      # output
    )

    wv_spec = (pl.BlockSpec((fc2, 1), lambda i: (0, 0)) if mxu_head
               else pl.BlockSpec((1, fc2), lambda i: (0, 0)))

    return pl.pallas_call(
        functools.partial(value_net_kernel, mxu_head=mxu_head),
        out_shape=jax.ShapeDtypeStruct((B, 1), jnp.float32),
        grid_spec=pltpu.PrefetchScalarGridSpec(
            num_scalar_prefetch=0,
            grid=grid,
            in_specs=[
                pl.BlockSpec((tm, in_dims), lambda i: (i, 0)),   # state tile
                pl.BlockSpec((in_dims, fc1), lambda i: (0, 0)),  # w1 (resident)
                pl.BlockSpec((1, fc1), lambda i: (0, 0)),        # b1 (resident)
                pl.BlockSpec((fc1, fc2), lambda i: (0, 0)),      # w2 (resident)
                pl.BlockSpec((1, fc2), lambda i: (0, 0)),        # b2 (resident)
                wv_spec,                                         # wv (resident)
                pl.BlockSpec((1, 1), lambda i: (0, 0)),          # bv (resident)
            ],
            out_specs=pl.BlockSpec((tm, 1), lambda i: (i, 0)),
        ),
        compiler_params=pltpu.CompilerParams(
            dimension_semantics=("parallel",),
        ),
        cost_estimate=pl.CostEstimate(
            flops=flops, transcendentals=0, bytes_accessed=bytes_accessed),
    )(state, w1, b1, w2, b2, wv, bv)


def init_params(key, input_dims, fc1_dims=256, fc2_dims=256, init_w=0.003):
    """Mimics PyTorch defaults (uniform +/- 1/sqrt(fan_in)) and the module's
    custom uniform(0, init_w) for the v head.  fc weights stored transposed as
    (in_features, out_features); v-head weight kept as a (1, fc2) row here."""
    k1, k2, k3, k4, k5, k6 = jax.random.split(key, 6)
    lim1 = 1.0 / jnp.sqrt(float(input_dims))
    lim2 = 1.0 / jnp.sqrt(float(fc1_dims))
    w1 = jax.random.uniform(k1, (input_dims, fc1_dims), jnp.float32, -lim1, lim1)
    b1 = jax.random.uniform(k2, (1, fc1_dims), jnp.float32, -lim1, lim1)
    w2 = jax.random.uniform(k3, (fc1_dims, fc2_dims), jnp.float32, -lim2, lim2)
    b2 = jax.random.uniform(k4, (1, fc2_dims), jnp.float32, -lim2, lim2)
    wv = jax.random.uniform(k5, (1, fc2_dims), jnp.float32, 0.0, init_w)
    bv = jax.random.uniform(k6, (1, 1), jnp.float32, 0.0, init_w)
    return w1, b1, w2, b2, wv, bv


def reference_forward(state, w1, b1, w2, b2, wv, bv):
    h1 = jnp.maximum(state @ w1 + b1, 0.0)
    h2 = jnp.maximum(h1 @ w2 + b2, 0.0)
    return jnp.sum(h2 * wv, axis=-1, keepdims=True) + bv


if __name__ == "__main__":
    key = jax.random.PRNGKey(0)
    kx, kp = jax.random.split(key)

    batch, input_dims = 8, 8  # small shapes; fc1/fc2 = 256 as in the module
    state = jax.random.normal(kx, (batch, input_dims), jnp.float32)
    params_f32 = init_params(kp, input_dims)

    mxu_head = not _is_v5e()          # v6e/v7x path by default
    params = prepare_params(*params_f32, mxu_head=mxu_head)

    v = value_network_forward(state, *params, mxu_head=mxu_head)
    v = jax.block_until_ready(v)

    v_ref = reference_forward(state, *params_f32)
    assert v.shape == (batch, 1)
    # bf16 MXU operands / bf16 epilogues (f32 accumulate) vs fp32 reference:
    # expect ~1e-2-level relative deviation from the fp32 PyTorch module.
    assert jnp.allclose(v, v_ref, atol=3e-2, rtol=3e-2), "mismatch vs JAX reference"

    print("KERNEL_OK")
</pallas_src>

<mosaic_0001>
module attributes {stable_mosaic.version = 11 : i64} {
  func.func @value_net_kernel(%arg0: i32, %arg1: memref<8x8xf32, #tpu.memory_space<vmem>>, %arg2: memref<8x256xbf16, #tpu.memory_space<vmem>>, %arg3: memref<1x256xbf16, #tpu.memory_space<vmem>>, %arg4: memref<256x256xbf16, #tpu.memory_space<vmem>>, %arg5: memref<1x256xbf16, #tpu.memory_space<vmem>>, %arg6: memref<256x1xbf16, #tpu.memory_space<vmem>>, %arg7: memref<1x1xf32, #tpu.memory_space<vmem>>, %arg8: memref<8x1xf32, #tpu.memory_space<vmem>>) attributes {dimension_semantics = [#tpu.dimension_semantics<parallel>], iteration_bounds = array<i64: 1>, scalar_prefetch = 0 : i64, scratch_operands = 0 : i64, tpu.core_type = #tpu.core_type<tc>, window_params = [{transform_indices = @transform_0, window_bounds = array<i64: 8, 8>}, {pipeline_mode = #tpu.pipeline_mode<synchronous>, transform_indices = @transform_1, window_bounds = array<i64: 8, 256>}, {pipeline_mode = #tpu.pipeline_mode<synchronous>, transform_indices = @transform_2, window_bounds = array<i64: 1, 256>}, {pipeline_mode = #tpu.pipeline_mode<synchronous>, transform_indices = @transform_3, window_bounds = array<i64: 256, 256>}, {pipeline_mode = #tpu.pipeline_mode<synchronous>, transform_indices = @transform_4, window_bounds = array<i64: 1, 256>}, {pipeline_mode = #tpu.pipeline_mode<synchronous>, transform_indices = @transform_5, window_bounds = array<i64: 256, 1>}, {pipeline_mode = #tpu.pipeline_mode<synchronous>, transform_indices = @transform_6, window_bounds = array<i64: 1, 1>}, {transform_indices = @transform_7, window_bounds = array<i64: 8, 1>}]} {
    %c0 = arith.constant 0 : index
    %c0_0 = arith.constant 0 : index
    %0 = vector.load %arg1[%c0, %c0_0] : memref<8x8xf32, #tpu.memory_space<vmem>>, vector<8x8xf32>
    %1 = arith.truncf %0 : vector<8x8xf32> to vector<8x8xbf16>
    %c0_1 = arith.constant 0 : index
    %c0_2 = arith.constant 0 : index
    %2 = vector.load %arg2[%c0_1, %c0_2] : memref<8x256xbf16, #tpu.memory_space<vmem>>, vector<8x256xbf16>
    %cst = arith.constant dense<0.000000e+00> : vector<8x256xf32>
    %3 = tpu.matmul %1, %2, %cst {dimension_numbers = #tpu.dot_dimension_numbers<[1], [0], [0], [1], [0, 0, 1, 1], [], []>} : vector<8x8xbf16>, vector<8x256xbf16>, vector<8x256xf32> -> vector<8x256xf32>
    %4 = arith.truncf %3 : vector<8x256xf32> to vector<8x256xbf16>
    %c0_3 = arith.constant 0 : index
    %c0_4 = arith.constant 0 : index
    %5 = vector.load %arg3[%c0_3, %c0_4] : memref<1x256xbf16, #tpu.memory_space<vmem>>, vector<1x256xbf16>
    %6 = vector.broadcast %5 : vector<1x256xbf16> to vector<8x256xbf16>
    %7 = arith.addf %4, %6 : vector<8x256xbf16>
    %cst_5 = arith.constant 0.000000e+00 : bf16
    %8 = vector.broadcast %cst_5 : bf16 to vector<8x256xbf16>
    %9 = arith.maximumf %7, %8 : vector<8x256xbf16>
    %c0_6 = arith.constant 0 : index
    %c0_7 = arith.constant 0 : index
    %10 = vector.load %arg4[%c0_6, %c0_7] : memref<256x256xbf16, #tpu.memory_space<vmem>>, vector<256x256xbf16>
    %cst_8 = arith.constant dense<0.000000e+00> : vector<8x256xf32>
    %11 = tpu.matmul %9, %10, %cst_8 {dimension_numbers = #tpu.dot_dimension_numbers<[1], [0], [0], [1], [0, 0, 1, 1], [], []>} : vector<8x256xbf16>, vector<256x256xbf16>, vector<8x256xf32> -> vector<8x256xf32>
    %12 = arith.truncf %11 : vector<8x256xf32> to vector<8x256xbf16>
    %c0_9 = arith.constant 0 : index
    %c0_10 = arith.constant 0 : index
    %13 = vector.load %arg5[%c0_9, %c0_10] : memref<1x256xbf16, #tpu.memory_space<vmem>>, vector<1x256xbf16>
    %14 = vector.broadcast %13 : vector<1x256xbf16> to vector<8x256xbf16>
    %15 = arith.addf %12, %14 : vector<8x256xbf16>
    %cst_11 = arith.constant 0.000000e+00 : bf16
    %16 = vector.broadcast %cst_11 : bf16 to vector<8x256xbf16>
    %17 = arith.maximumf %15, %16 : vector<8x256xbf16>
    %c0_12 = arith.constant 0 : index
    %c0_13 = arith.constant 0 : index
    %18 = vector.load %arg6[%c0_12, %c0_13] : memref<256x1xbf16, #tpu.memory_space<vmem>>, vector<256x1xbf16>
    %cst_14 = arith.constant dense<0.000000e+00> : vector<8x1xf32>
    %19 = tpu.matmul %17, %18, %cst_14 {dimension_numbers = #tpu.dot_dimension_numbers<[1], [0], [0], [1], [0, 0, 1, 1], [], []>} : vector<8x256xbf16>, vector<256x1xbf16>, vector<8x1xf32> -> vector<8x1xf32>
    %c0_15 = arith.constant 0 : index
    %c0_16 = arith.constant 0 : index
    %20 = vector.load %arg7[%c0_15, %c0_16] : memref<1x1xf32, #tpu.memory_space<vmem>>, vector<1x1xf32>
    %21 = vector.broadcast %20 : vector<1x1xf32> to vector<8x1xf32>
    %22 = arith.addf %19, %21 : vector<8x1xf32>
    %c0_17 = arith.constant 0 : index
    %c0_18 = arith.constant 0 : index
    %23 = vector.load %arg8[%c0_17, %c0_18] : memref<8x1xf32, #tpu.memory_space<vmem>>, vector<8x1xf32>
    tpu.vector_store %arg8[%c0_17, %c0_18], %22 {strides = array<i32>} : memref<8x1xf32, #tpu.memory_space<vmem>>, vector<8x1xf32>,
    return
  }
  func.func @transform_0(%arg0: i32) -> (i32, i32) {
    %c0_i32 = arith.constant 0 : i32
    %c0_i32_0 = arith.constant 0 : i32
    return %arg0, %c0_i32 : i32, i32
  }
  func.func @transform_1(%arg0: i32) -> (i32, i32) {
    %c0_i32 = arith.constant 0 : i32
    %c0_i32_0 = arith.constant 0 : i32
    %c0_i32_1 = arith.constant 0 : i32
    return %c0_i32, %c0_i32_0 : i32, i32
  }
  func.func @transform_2(%arg0: i32) -> (i32, i32) {
    %c0_i32 = arith.constant 0 : i32
    %c0_i32_0 = arith.constant 0 : i32
    %c0_i32_1 = arith.constant 0 : i32
    return %c0_i32, %c0_i32_0 : i32, i32
  }
  func.func @transform_3(%arg0: i32) -> (i32, i32) {
    %c0_i32 = arith.constant 0 : i32
    %c0_i32_0 = arith.constant 0 : i32
    %c0_i32_1 = arith.constant 0 : i32
    return %c0_i32, %c0_i32_0 : i32, i32
  }
  func.func @transform_4(%arg0: i32) -> (i32, i32) {
    %c0_i32 = arith.constant 0 : i32
    %c0_i32_0 = arith.constant 0 : i32
    %c0_i32_1 = arith.constant 0 : i32
    return %c0_i32, %c0_i32_0 : i32, i32
  }
  func.func @transform_5(%arg0: i32) -> (i32, i32) {
    %c0_i32 = arith.constant 0 : i32
    %c0_i32_0 = arith.constant 0 : i32
    %c0_i32_1 = arith.constant 0 : i32
    return %c0_i32, %c0_i32_0 : i32, i32
  }
  func.func @transform_6(%arg0: i32) -> (i32, i32) {
    %c0_i32 = arith.constant 0 : i32
    %c0_i32_0 = arith.constant 0 : i32
    %c0_i32_1 = arith.constant 0 : i32
    return %c0_i32, %c0_i32_0 : i32, i32
  }
  func.func @transform_7(%arg0: i32) -> (i32, i32) {
    %c0_i32 = arith.constant 0 : i32
    %c0_i32_0 = arith.constant 0 : i32
    return %arg0, %c0_i32 : i32, i32
  }
}

</mosaic_0001>

<llo_original>
// kernel: value_network_forward.1
$region0: #{value_network_forward.1}
  #allocation0 [shape = 'u32[]', space=smem, size = 0x4, offset = 0x4, fixed_abs, tag = 'smem constant byte address 0x4 - core index']
  #allocation1 [shape = 'u32[72,128]{1,0:T(1,128)}', space=vmem, size = 0x9000, scoped, tag = 'internal scratch']
  #allocation2 [shape = 'f32[1,1]{1,0:T(1,128)S(1)}', space=vmem, size = 0x200, scoped, tag = 'scoped memory for value_network_forward.1']
  %s0 = inlined_call_operand.vmem [shape: f32[8,8], index: 0, kind: input, shape index: {}]
  %s1 = inlined_call_operand.vmem [shape: bf16[8,256], index: 1, kind: input, shape index: {}]
  %s2 = inlined_call_operand.vmem [shape: bf16[1,256], index: 2, kind: input, shape index: {}]
  %s3 = inlined_call_operand.hbm [shape: bf16[256,256], index: 3, kind: input, shape index: {}]
  %s4 = inlined_call_operand.vmem [shape: bf16[1,256], index: 4, kind: input, shape index: {}]
  %s5 = inlined_call_operand.vmem [shape: bf16[256,1], index: 5, kind: input, shape index: {}]
  %s6 = inlined_call_operand.<no memory space> [shape: f32[1,1], index: 6, kind: input, shape index: {}]
  %s7 = inlined_call_operand.vmem [shape: f32[8,1], index: 7, kind: output, shape index: {}]
  %s8 = sld [smem:[#allocation0]]
  $region42: #{value_network_forward.1} parent=0
    _
  %s10 = ssub.s32 1, %s8
  %s11 = scalar_select 0, %s10, %s8
  %v12 = vstv %s6
  %13 = vst [vmem:[#allocation2] sm:$0x1] %v12
  $region1: #{value_network_forward.1} parent=0
    #allocation3 [shape = 'u8[131072]{0}', space=vmem, size = 0x20000, scoped, tag = 'input window, operand 3, single buffered']
    #allocation4 [shape = 's32[1]{0}', space=sflag, size = 0x4, scoped, tag = 'scoped memory for value_network_forward.1']
    %14 = vsyncpa [#allocation4], 0
    // Predicated region
    $region2: #{value_network_forward.1} parent=1 // pred_check
      _
    $region3: #{value_network_forward.1} parent=1 // pred_check_branch
      %16 = sbr.rel (0) target = $region5
    $region4: #{value_network_forward.1} parent=1 // pred_region
      _
    $region5: #{value_network_forward.1} parent=1 // pred_fallthru
      _
    // Predicated region
    $region6: #{value_network_forward.1} parent=1 // pred_check
      _
    $region7: #{value_network_forward.1} parent=1 // pred_check_branch
      %18 = sbr.rel (0) target = $region9
    $region8: #{value_network_forward.1} parent=1 // pred_region
      _
    $region9: #{value_network_forward.1} parent=1 // pred_fallthru
      _
    // Predicated region
    $region10: #{value_network_forward.1} parent=1 // pred_check
      _
    $region11: #{value_network_forward.1} parent=1 // pred_check_branch
      %20 = sbr.rel (0) target = $region13
    $region12: #{value_network_forward.1} parent=1 // pred_region
      _
    $region13: #{value_network_forward.1} parent=1 // pred_fallthru
      _
    // Predicated region
    $region14: #{value_network_forward.1} parent=1 // pred_check
      _
    $region15: #{value_network_forward.1} parent=1 // pred_check_branch
      %22 = sbr.rel (0) target = $region17
    $region16: #{value_network_forward.1} parent=1 // pred_region
      %24 = vsyncadd [#allocation4], 0
      %s25 = sshll.u32 %s3, 4
      %s26 = int_to_ptr.hbm [resolvable:$true] %s25
      %s27 = sshll.u32 [#allocation3], 4
      %s28 = int_to_ptr.vmem [resolvable:$true] %s27
      %33 = dma.hbm_to_vmem [thread:$0]  %s26, 4096, %s28, [#allocation4], 128, 128, 8
    $region17: #{value_network_forward.1} parent=1 // pred_fallthru
      _
    // Predicated region
    $region18: #{value_network_forward.1} parent=1 // pred_check
      _
    $region19: #{value_network_forward.1} parent=1 // pred_check_branch
      %35 = sbr.rel (0) target = $region21
    $region20: #{value_network_forward.1} parent=1 // pred_region
      _
    $region21: #{value_network_forward.1} parent=1 // pred_fallthru
      _
    // Predicated region
    $region22: #{value_network_forward.1} parent=1 // pred_check
      _
    $region23: #{value_network_forward.1} parent=1 // pred_check_branch
      %37 = sbr.rel (0) target = $region25
    $region24: #{value_network_forward.1} parent=1 // pred_region
      _
    $region25: #{value_network_forward.1} parent=1 // pred_fallthru
      _
    // Predicated region
    $region26: #{value_network_forward.1} parent=1 // pred_check
      _
    $region27: #{value_network_forward.1} parent=1 // pred_check_branch
      %39 = sbr.rel (0) target = $region29
    $region28: #{value_network_forward.1} parent=1 // pred_region
      _
    $region29: #{value_network_forward.1} parent=1 // pred_fallthru
      _
    // Predicated region
    $region30: #{value_network_forward.1} parent=1 // pred_check
      _
    $region31: #{value_network_forward.1} parent=1 // pred_check_branch
      %41 = sbr.rel (0) target = $region33
    $region32: #{value_network_forward.1} parent=1 // pred_region
      %43 = dma.done [#allocation4], 4096
    $region33: #{value_network_forward.1} parent=1 // pred_fallthru
      _
    %v45 = vld [vmem:[%s0] sm:$0xff]
    %v46 = vpack.c.bf16 %v45, %v45
    %v47 = vld [vmem:[%s1] sm:$0xff]
    %v49 = vunpack.c.l.b16 %v47
    %v50 = vunpack.c.h.b16 %v47
    %v51 = vpack.c.b16 %v49, %v49
    %v52 = vpack.c.b16 %v50, %v50
    %vm53 = vcmask 64512
    %v55 = vsel %vm53, %v46, 0
    %vm57 = vcmask 1043456
    %v59 = vsel %vm57, %v51, 0
    %v62 = vsel %vm57, %v52, 0
    %64 = vmatpush.bf16.msra.mxu0 0
    %65 = vmatpush.bf16.msra.mxu0 0
    %66 = vmatpush.bf16.msra.mxu0 0
    %67 = vmatpush.bf16.msra.mxu0 0
    %68 = vmatpush.bf16.msra.mxu0 0
    %69 = vmatpush.bf16.msra.mxu0 0
    %70 = vmatpush.bf16.msra.mxu0 0
    %71 = vmatpush.bf16.msra.mxu0 %v59
    %72 = vmatmul.bf16.gmra.mxu0 %v55
    %v73 = vpop.f32.mrf.mxu0
    %v74 = vadd.f32 0.0, %v73
    %v75 = vpop.f32.mrf.mxu0
    %76 = vdwg.mxu0
    %77 = vmatpush.bf16.msra.mxu0 0
    %78 = vmatpush.bf16.msra.mxu0 0
    %79 = vmatpush.bf16.msra.mxu0 0
    %80 = vmatpush.bf16.msra.mxu0 0
    %81 = vmatpush.bf16.msra.mxu0 0
    %82 = vmatpush.bf16.msra.mxu0 0
    %83 = vmatpush.bf16.msra.mxu0 0
    %84 = vmatpush.bf16.msra.mxu0 %v62
    %85 = vmatmul.bf16.gmra.mxu0 %v55
    %v86 = vpop.f32.mrf.mxu0
    %v87 = vadd.f32 0.0, %v86
    %v88 = vpop.f32.mrf.mxu0
    %89 = vdwg.mxu0
    %v90 = vpack.c.bf16 %v87, %v74
    %v91 = vld [vmem:[%s2] sm:$0x3]
    %93 = vst [vmem:[#allocation1] ss:$9 sm:$0xff] %v91
    %v94 = vld [vmem:[#allocation1] sm:$0xff]
    %v95 = vld [vmem:[#allocation1 + $0x9] sm:$0xff]
    %v96 = vpack.i.b16 %v94, %v94
    %v98 = vperm.slane %v96, 0
    %v99 = vpack.i.b16 %v95, %v95
    %v101 = vperm.slane %v99, 0
    %v102 = vunpack.c.l.bf16 %v90
    %v103 = vunpack.c.h.bf16 %v90
    %v104 = vunpack.c.l.bf16 %v98
    %v105 = vunpack.c.l.bf16 %v101
    %v106 = vadd.f32 %v102, %v104
    %v107 = vadd.f32 %v103, %v105
    %v108 = vpack.c.bf16 %v107, %v106
    %v109 = vunpack.c.l.bf16 %v108
    %v110 = vunpack.c.h.bf16 %v108
    %v111 = vmax.f32 %v109, 0.0
    %v112 = vmax.f32 %v110, 0.0
    %v113 = vpack.c.bf16 %v111, %v111
    %v114 = vpack.c.bf16 %v112, %v112
    %v115 = vld [vmem:[#allocation3] sm:$0xff]
    %v116 = vld [vmem:[#allocation3 + $0x8] sm:$0xff]
    %v117 = vld [vmem:[#allocation3 + $0x10] sm:$0xff]
    %v118 = vld [vmem:[#allocation3 + $0x18] sm:$0xff]
    %v119 = vld [vmem:[#allocation3 + $0x20] sm:$0xff]
    %v120 = vld [vmem:[#allocation3 + $0x28] sm:$0xff]
    %v121 = vld [vmem:[#allocation3 + $0x30] sm:$0xff]
    %v122 = vld [vmem:[#allocation3 + $0x38] sm:$0xff]
    %v123 = vld [vmem:[#allocation3 + $0x40] sm:$0xff]
    %v124 = vld [vmem:[#allocation3 + $0x48] sm:$0xff]
    %v125 = vld [vmem:[#allocation3 + $0x50] sm:$0xff]
    %v126 = vld [vmem:[#allocation3 + $0x58] sm:$0xff]
    %v127 = vld [vmem:[#allocation3 + $0x60] sm:$0xff]
    %v128 = vld [vmem:[#allocation3 + $0x68] sm:$0xff]
    %v129 = vld [vmem:[#allocation3 + $0x70] sm:$0xff]
    %v130 = vld [vmem:[#allocation3 + $0x78] sm:$0xff]
    %v131 = vld [vmem:[#allocation3 + $0x80] sm:$0xff]
    %v132 = vld [vmem:[#allocation3 + $0x88] sm:$0xff]
    %v133 = vld [vmem:[#allocation3 + $0x90] sm:$0xff]
    %v134 = vld [vmem:[#allocation3 + $0x98] sm:$0xff]
    %v135 = vld [vmem:[#allocation3 + $0xa0] sm:$0xff]
    %v136 = vld [vmem:[#allocation3 + $0xa8] sm:$0xff]
    %v137 = vld [vmem:[#allocation3 + $0xb0] sm:$0xff]
    %v138 = vld [vmem:[#allocation3 + $0xb8] sm:$0xff]
    %v139 = vld [vmem:[#allocation3 + $0xc0] sm:$0xff]
    %v140 = vld [vmem:[#allocation3 + $0xc8] sm:$0xff]
    %v141 = vld [vmem:[#allocation3 + $0xd0] sm:$0xff]
    %v142 = vld [vmem:[#allocation3 + $0xd8] sm:$0xff]
    %v143 = vld [vmem:[#allocation3 + $0xe0] sm:$0xff]
    %v144 = vld [vmem:[#allocation3 + $0xe8] sm:$0xff]
    %v145 = vld [vmem:[#allocation3 + $0xf0] sm:$0xff]
    %v146 = vld [vmem:[#allocation3 + $0xf8] sm:$0xff]
    %v179 = vunpack.c.l.b16 %v115
    %v180 = vunpack.c.h.b16 %v115
    %v181 = vunpack.c.l.b16 %v116
    %v182 = vunpack.c.h.b16 %v116
    %v183 = vunpack.c.l.b16 %v117
    %v184 = vunpack.c.h.b16 %v117
    %v185 = vunpack.c.l.b16 %v118
    %v186 = vunpack.c.h.b16 %v118
    %v187 = vunpack.c.l.b16 %v119
    %v188 = vunpack.c.h.b16 %v119
    %v189 = vunpack.c.l.b16 %v120
    %v190 = vunpack.c.h.b16 %v120
    %v191 = vunpack.c.l.b16 %v121
    %v192 = vunpack.c.h.b16 %v121
    %v193 = vunpack.c.l.b16 %v122
    %v194 = vunpack.c.h.b16 %v122
    %v195 = vunpack.c.l.b16 %v123
    %v196 = vunpack.c.h.b16 %v123
    %v197 = vunpack.c.l.b16 %v124
    %v198 = vunpack.c.h.b16 %v124
    %v199 = vunpack.c.l.b16 %v125
    %v200 = vunpack.c.h.b16 %v125
    %v201 = vunpack.c.l.b16 %v126
    %v202 = vunpack.c.h.b16 %v126
    %v203 = vunpack.c.l.b16 %v127
    %v204 = vunpack.c.h.b16 %v127
    %v205 = vunpack.c.l.b16 %v128
    %v206 = vunpack.c.h.b16 %v128
    %v207 = vunpack.c.l.b16 %v129
    %v208 = vunpack.c.h.b16 %v129
    %v209 = vunpack.c.l.b16 %v130
    %v210 = vunpack.c.h.b16 %v130
    %v211 = vunpack.c.l.b16 %v131
    %v212 = vunpack.c.h.b16 %v131
    %v213 = vunpack.c.l.b16 %v132
    %v214 = vunpack.c.h.b16 %v132
    %v215 = vunpack.c.l.b16 %v133
    %v216 = vunpack.c.h.b16 %v133
    %v217 = vunpack.c.l.b16 %v134
    %v218 = vunpack.c.h.b16 %v134
    %v219 = vunpack.c.l.b16 %v135
    %v220 = vunpack.c.h.b16 %v135
    %v221 = vunpack.c.l.b16 %v136
    %v222 = vunpack.c.h.b16 %v136
    %v223 = vunpack.c.l.b16 %v137
    %v224 = vunpack.c.h.b16 %v137
    %v225 = vunpack.c.l.b16 %v138
    %v226 = vunpack.c.h.b16 %v138
    %v227 = vunpack.c.l.b16 %v139
    %v228 = vunpack.c.h.b16 %v139
    %v229 = vunpack.c.l.b16 %v140
    %v230 = vunpack.c.h.b16 %v140
    %v231 = vunpack.c.l.b16 %v141
    %v232 = vunpack.c.h.b16 %v141
    %v233 = vunpack.c.l.b16 %v142
    %v234 = vunpack.c.h.b16 %v142
    %v235 = vunpack.c.l.b16 %v143
    %v236 = vunpack.c.h.b16 %v143
    %v237 = vunpack.c.l.b16 %v144
    %v238 = vunpack.c.h.b16 %v144
    %v239 = vunpack.c.l.b16 %v145
    %v240 = vunpack.c.h.b16 %v145
    %v241 = vunpack.c.l.b16 %v146
    %v242 = vunpack.c.h.b16 %v146
    %v243 = vpack.c.b16 %v181, %v179
    %v244 = vpack.c.b16 %v182, %v180
    %v245 = vpack.c.b16 %v185, %v183
    %v246 = vpack.c.b16 %v186, %v184
    %v247 = vpack.c.b16 %v189, %v187
    %v248 = vpack.c.b16 %v190, %v188
    %v249 = vpack.c.b16 %v193, %v191
    %v250 = vpack.c.b16 %v194, %v192
    %v251 = vpack.c.b16 %v197, %v195
    %v252 = vpack.c.b16 %v198, %v196
    %v253 = vpack.c.b16 %v201, %v199
    %v254 = vpack.c.b16 %v202, %v200
    %v255 = vpack.c.b16 %v205, %v203
    %v256 = vpack.c.b16 %v206, %v204
    %v257 = vpack.c.b16 %v209, %v207
    %v258 = vpack.c.b16 %v210, %v208
    %v259 = vpack.c.b16 %v213, %v211
    %v260 = vpack.c.b16 %v214, %v212
    %v261 = vpack.c.b16 %v217, %v215
    %v262 = vpack.c.b16 %v218, %v216
    %v263 = vpack.c.b16 %v221, %v219
    %v264 = vpack.c.b16 %v222, %v220
    %v265 = vpack.c.b16 %v225, %v223
    %v266 = vpack.c.b16 %v226, %v224
    %v267 = vpack.c.b16 %v229, %v227
    %v268 = vpack.c.b16 %v230, %v228
    %v269 = vpack.c.b16 %v233, %v231
    %v270 = vpack.c.b16 %v234, %v232
    %v271 = vpack.c.b16 %v237, %v235
    %v272 = vpack.c.b16 %v238, %v236
    %v273 = vpack.c.b16 %v241, %v239
    %v274 = vpack.c.b16 %v242, %v240
    %307 = vmatpush.bf16.msra.mxu0 %v257
    %308 = vmatpush.bf16.msra.mxu0 %v255
    %309 = vmatpush.bf16.msra.mxu0 %v253
    %310 = vmatpush.bf16.msra.mxu0 %v251
    %311 = vmatpush.bf16.msra.mxu0 %v249
    %312 = vmatpush.bf16.msra.mxu0 %v247
    %313 = vmatpush.bf16.msra.mxu0 %v245
    %314 = vmatpush.bf16.msra.mxu0 %v243
    %315 = vmatmul.bf16.gmra.mxu0 %v113
    %v316 = vpop.f32.mrf.mxu0
    %v317 = vadd.f32 0.0, %v316
    %v318 = vpop.f32.mrf.mxu0
    %319 = vdwg.mxu0
    %320 = vmatpush.bf16.msra.mxu0 %v273
    %321 = vmatpush.bf16.msra.mxu0 %v271
    %322 = vmatpush.bf16.msra.mxu0 %v269
    %323 = vmatpush.bf16.msra.mxu0 %v267
    %324 = vmatpush.bf16.msra.mxu0 %v265
    %325 = vmatpush.bf16.msra.mxu0 %v263
    %326 = vmatpush.bf16.msra.mxu0 %v261
    %327 = vmatpush.bf16.msra.mxu0 %v259
    %328 = vmatmul.bf16.gmra.mxu0 %v114
    %v329 = vpop.f32.mrf.mxu0
    %v330 = vadd.f32 %v317, %v329
    %v331 = vpop.f32.mrf.mxu0
    %332 = vdwg.mxu0
    %333 = vmatpush.bf16.msra.mxu0 %v258
    %334 = vmatpush.bf16.msra.mxu0 %v256
    %335 = vmatpush.bf16.msra.mxu0 %v254
    %336 = vmatpush.bf16.msra.mxu0 %v252
    %337 = vmatpush.bf16.msra.mxu0 %v250
    %338 = vmatpush.bf16.msra.mxu0 %v248
    %339 = vmatpush.bf16.msra.mxu0 %v246
    %340 = vmatpush.bf16.msra.mxu0 %v244
    %341 = vmatmul.bf16.gmra.mxu0 %v113
    %v342 = vpop.f32.mrf.mxu0
    %v343 = vadd.f32 0.0, %v342
    %v344 = vpop.f32.mrf.mxu0
    %345 = vdwg.mxu0
    %346 = vmatpush.bf16.msra.mxu0 %v274
    %347 = vmatpush.bf16.msra.mxu0 %v272
    %348 = vmatpush.bf16.msra.mxu0 %v270
    %349 = vmatpush.bf16.msra.mxu0 %v268
    %350 = vmatpush.bf16.msra.mxu0 %v266
    %351 = vmatpush.bf16.msra.mxu0 %v264
    %352 = vmatpush.bf16.msra.mxu0 %v262
    %353 = vmatpush.bf16.msra.mxu0 %v260
    %354 = vmatmul.bf16.gmra.mxu0 %v114
    %v355 = vpop.f32.mrf.mxu0
    %v356 = vadd.f32 %v343, %v355
    %v357 = vpop.f32.mrf.mxu0
    %358 = vdwg.mxu0
    %v359 = vpack.c.bf16 %v356, %v330
    %v360 = vld [vmem:[%s4] sm:$0x3]
    %362 = vst [vmem:[#allocation1] ss:$9 sm:$0xff] %v360
    %v363 = vld [vmem:[#allocation1] sm:$0xff]
    %v364 = vld [vmem:[#allocation1 + $0x9] sm:$0xff]
    %v365 = vpack.i.b16 %v363, %v363
    %v367 = vperm.slane %v365, 0
    %v368 = vpack.i.b16 %v364, %v364
    %v370 = vperm.slane %v368, 0
    %v371 = vunpack.c.l.bf16 %v359
    %v372 = vunpack.c.h.bf16 %v359
    %v373 = vunpack.c.l.bf16 %v367
    %v374 = vunpack.c.l.bf16 %v370
    %v375 = vadd.f32 %v371, %v373
    %v376 = vadd.f32 %v372, %v374
    %v377 = vpack.c.bf16 %v376, %v375
    %v378 = vunpack.c.l.bf16 %v377
    %v379 = vunpack.c.h.bf16 %v377
    %v380 = vmax.f32 %v378, 0.0
    %v381 = vmax.f32 %v379, 0.0
    %v382 = vpack.c.bf16 %v380, %v380
    %v383 = vpack.c.bf16 %v381, %v381
    %v384 = vld [vmem:[%s5] sm:$0xf]
    %v385 = vld [vmem:[%s5 + $0x4] sm:$0xf]
    %v386 = vld [vmem:[%s5 + $0x8] sm:$0xf]
    %v387 = vld [vmem:[%s5 + $0xc] sm:$0xf]
    %v388 = vld [vmem:[%s5 + $0x10] sm:$0xf]
    %v389 = vld [vmem:[%s5 + $0x14] sm:$0xf]
    %v390 = vld [vmem:[%s5 + $0x18] sm:$0xf]
    %v391 = vld [vmem:[%s5 + $0x1c] sm:$0xf]
    %v392 = vld [vmem:[%s5 + $0x20] sm:$0xf]
    %v393 = vld [vmem:[%s5 + $0x24] sm:$0xf]
    %v394 = vld [vmem:[%s5 + $0x28] sm:$0xf]
    %v395 = vld [vmem:[%s5 + $0x2c] sm:$0xf]
    %v396 = vld [vmem:[%s5 + $0x30] sm:$0xf]
    %v397 = vld [vmem:[%s5 + $0x34] sm:$0xf]
    %v398 = vld [vmem:[%s5 + $0x38] sm:$0xf]
    %v399 = vld [vmem:[%s5 + $0x3c] sm:$0xf]
    %v400 = vld [vmem:[%s5 + $0x40] sm:$0xf]
    %v401 = vld [vmem:[%s5 + $0x44] sm:$0xf]
    %v402 = vld [vmem:[%s5 + $0x48] sm:$0xf]
    %v403 = vld [vmem:[%s5 + $0x4c] sm:$0xf]
    %v404 = vld [vmem:[%s5 + $0x50] sm:$0xf]
    %v405 = vld [vmem:[%s5 + $0x54] sm:$0xf]
    %v406 = vld [vmem:[%s5 + $0x58] sm:$0xf]
    %v407 = vld [vmem:[%s5 + $0x5c] sm:$0xf]
    %v408 = vld [vmem:[%s5 + $0x60] sm:$0xf]
    %v409 = vld [vmem:[%s5 + $0x64] sm:$0xf]
    %v410 = vld [vmem:[%s5 + $0x68] sm:$0xf]
    %v411 = vld [vmem:[%s5 + $0x6c] sm:$0xf]
    %v412 = vld [vmem:[%s5 + $0x70] sm:$0xf]
    %v413 = vld [vmem:[%s5 + $0x74] sm:$0xf]
    %v414 = vld [vmem:[%s5 + $0x78] sm:$0xf]
    %v415 = vld [vmem:[%s5 + $0x7c] sm:$0xf]
    %v416 = vld [vmem:[#allocation2] sm:$0x1]
    %v418 = vperm.slane %v416, 0
    %v452 = vunpack.c.l.b16 %v384
    %v453 = vunpack.c.l.b16 %v385
    %v454 = vunpack.c.l.b16 %v386
    %v455 = vunpack.c.l.b16 %v387
    %v456 = vunpack.c.l.b16 %v388
    %v457 = vunpack.c.l.b16 %v389
    %v458 = vunpack.c.l.b16 %v390
    %v459 = vunpack.c.l.b16 %v391
    %v460 = vunpack.c.l.b16 %v392
    %v461 = vunpack.c.l.b16 %v393
    %v462 = vunpack.c.l.b16 %v394
    %v463 = vunpack.c.l.b16 %v395
    %v464 = vunpack.c.l.b16 %v396
    %v465 = vunpack.c.l.b16 %v397
    %v466 = vunpack.c.l.b16 %v398
    %v467 = vunpack.c.l.b16 %v399
    %v468 = vunpack.c.l.b16 %v400
    %v469 = vunpack.c.l.b16 %v401
    %v470 = vunpack.c.l.b16 %v402
    %v471 = vunpack.c.l.b16 %v403
    %v472 = vunpack.c.l.b16 %v404
    %v473 = vunpack.c.l.b16 %v405
    %v474 = vunpack.c.l.b16 %v406
    %v475 = vunpack.c.l.b16 %v407
    %v476 = vunpack.c.l.b16 %v408
    %v477 = vunpack.c.l.b16 %v409
    %v478 = vunpack.c.l.b16 %v410
    %v479 = vunpack.c.l.b16 %v411
    %v480 = vunpack.c.l.b16 %v412
    %v481 = vunpack.c.l.b16 %v413
    %v482 = vunpack.c.l.b16 %v414
    %v483 = vunpack.c.l.b16 %v415
    %v484 = vpack.c.b16 %v453, %v452
    %v485 = vpack.c.b16 %v455, %v454
    %v486 = vpack.c.b16 %v457, %v456
    %v487 = vpack.c.b16 %v459, %v458
    %v488 = vpack.c.b16 %v461, %v460
    %v489 = vpack.c.b16 %v463, %v462
    %v490 = vpack.c.b16 %v465, %v464
    %v491 = vpack.c.b16 %v467, %v466
    %v492 = vpack.c.b16 %v469, %v468
    %v493 = vpack.c.b16 %v471, %v470
    %v494 = vpack.c.b16 %v473, %v472
    %v495 = vpack.c.b16 %v475, %v474
    %v496 = vpack.c.b16 %v477, %v476
    %v497 = vpack.c.b16 %v479, %v478
    %v498 = vpack.c.b16 %v481, %v480
    %v499 = vpack.c.b16 %v483, %v482
    %516 = vmatpush.bf16.msra.mxu0 %v491
    %517 = vmatpush.bf16.msra.mxu0 %v490
    %518 = vmatpush.bf16.msra.mxu0 %v489
    %519 = vmatpush.bf16.msra.mxu0 %v488
    %520 = vmatpush.bf16.msra.mxu0 %v487
    %521 = vmatpush.bf16.msra.mxu0 %v486
    %522 = vmatpush.bf16.msra.mxu0 %v485
    %523 = vmatpush.bf16.msra.mxu0 %v484
    %524 = vmatmul.bf16.gmra.mxu0 %v382
    %v525 = vpop.f32.mrf.mxu0
    %v526 = vadd.f32 %v418, %v525
    %v527 = vpop.f32.mrf.mxu0
    %528 = vdwg.mxu0
    %529 = vmatpush.bf16.msra.mxu0 %v499
    %530 = vmatpush.bf16.msra.mxu0 %v498
    %531 = vmatpush.bf16.msra.mxu0 %v497
    %532 = vmatpush.bf16.msra.mxu0 %v496
    %533 = vmatpush.bf16.msra.mxu0 %v495
    %534 = vmatpush.bf16.msra.mxu0 %v494
    %535 = vmatpush.bf16.msra.mxu0 %v493
    %536 = vmatpush.bf16.msra.mxu0 %v492
    %537 = vmatmul.bf16.gmra.mxu0 %v383
    %v538 = vpop.f32.mrf.mxu0
    %v539 = vadd.f32 %v526, %v538
    %v540 = vpop.f32.mrf.mxu0
    %541 = vdwg.mxu0
    %vm542 = vcmask 7168
    %543 = vst.msk [vmem:[%s7] sm:$0xff] %vm542, %v539
    // Predicated region
    $region34: #{value_network_forward.1} parent=1 // pred_check
      _
    $region35: #{value_network_forward.1} parent=1 // pred_check_branch
      %545 = sbr.rel (0) target = $region37
    $region36: #{value_network_forward.1} parent=1 // pred_region
      _
    $region37: #{value_network_forward.1} parent=1 // pred_fallthru
      _
    // Predicated region
    $region38: #{value_network_forward.1} parent=1 // pred_check
      _
    $region39: #{value_network_forward.1} parent=1 // pred_check_branch
      %547 = sbr.rel (0) target = $region41
    $region40: #{value_network_forward.1} parent=1 // pred_region
      _
    $region41: #{value_network_forward.1} parent=1 // pred_fallthru
      _
    %548 = vsyncpa [#allocation4], 1

</llo_original>
